<compile_context>
chip_gen: v5e
topology: v5e:2x2
jax: 0.10.0
libtpu: 0.0.40
codegen_flags: <defaults>
</compile_context>

<pallas_src>
import functools

import jax
import jax.numpy as jnp
from jax.experimental import pallas as pl
from jax.experimental.pallas import tpu as pltpu


def _mlp_kernel(x_ref, w1_ref, b1_ref, w2_ref, b2_ref,
                w3_ref, b3_ref, w4_ref, b4_ref, o_ref, *, compute_dtype):
    # MXU matmuls in compute_dtype (bf16 default -> full-rate MXU on v6e/v7x)
    # with f32 accumulation. Bias add + tanh stay in f32 (safe on v5e, whose
    # VPU/EUP have no bf16 path), then cast back before the next MXU pass.
    # Weights/biases arrive already in their compute dtypes (pre-cast in the
    # wrapper), so no per-step casts here.
    h = x_ref[...].astype(compute_dtype)
    h = jnp.tanh(jnp.dot(h, w1_ref[...], preferred_element_type=jnp.float32)
                 + b1_ref[...]).astype(compute_dtype)
    h = jnp.tanh(jnp.dot(h, w2_ref[...], preferred_element_type=jnp.float32)
                 + b2_ref[...]).astype(compute_dtype)
    h = jnp.tanh(jnp.dot(h, w3_ref[...], preferred_element_type=jnp.float32)
                 + b3_ref[...]).astype(compute_dtype)
    out = jnp.dot(h, w4_ref[...], preferred_element_type=jnp.float32) + b4_ref[...]
    o_ref[...] = out.astype(o_ref.dtype)


def _choose_batch_tile(B, max_tile):
    """grid=1 (tile=B) when the batch fits the VMEM-safe cap; otherwise split
    into an even number of 128-row-aligned steps (balances v7x's two
    TensorCores) with padding waste bounded by < 1 tile."""
    if B <= max_tile:
        return B
    n_steps = pl.cdiv(B, max_tile)
    if n_steps % 2:
        n_steps += 1                      # even split across v7x TCs
    tile = pl.cdiv(B, n_steps)
    return ((tile + 127) // 128) * 128    # 128-row MXU/sublane alignment


def qpolicy_forward(x, params, *, batch_tile=None, compute_dtype=jnp.bfloat16,
                    max_batch_tile=2048, lane_dense_out=True):
    """QPolicy MLP forward pass with a fused Pallas kernel.

    x: [B, n_states] float32
    params: dict with w1,b1,...,w4,b4 (weights [in, out], biases [1, out])
    compute_dtype: dtype fed to the MXU (bf16 default; jnp.float32 gives a
                   bit-faithful f32 path).
    """
    B, n_states = x.shape
    n_out = params["w4"].shape[1]
    n_out_pad = ((n_out + 127) // 128) * 128 if lane_dense_out else n_out

    if batch_tile is None:
        tile = _choose_batch_tile(B, max_batch_tile)
    else:
        tile = max(1, min(batch_tile, B))
        if tile < B and tile % 8:
            tile = max(8, (tile // 8) * 8)    # partial blocks obey (8,128) rule
    grid_b = pl.cdiv(B, tile)
    B_pad = grid_b * tile
    # Padding (if any) is < 1 tile; the grid=1 path never pads and never copies.
    xp = x if B_pad == B else jnp.pad(x, ((0, B_pad - B), (0, 0)))

    def x_map(i):
        return (i, 0)

    def const_map(i):
        # Same block every step -> weights/biases stay VMEM-resident, no re-DMA.
        return (0, 0)

    in_specs = [pl.BlockSpec((tile, n_states), x_map)]
    args = [xp]
    for l in range(1, 5):
        w = params[f"w{l}"].astype(compute_dtype)     # pre-cast once (tiny arrays)
        b = params[f"b{l}"].astype(jnp.float32)       # bias adds stay f32
        if l == 4 and n_out_pad != n_out:
            # Zero-pad the last layer to 128 output lanes -> lane-dense stores.
            w = jnp.pad(w, ((0, 0), (0, n_out_pad - n_out)))
            b = jnp.pad(b, ((0, 0), (0, n_out_pad - n_out)))
        in_specs.append(pl.BlockSpec(w.shape, const_map))
        in_specs.append(pl.BlockSpec(b.shape, const_map))
        args.append(w)
        args.append(b)

    out = pl.pallas_call(
        functools.partial(_mlp_kernel, compute_dtype=compute_dtype),
        out_shape=jax.ShapeDtypeStruct((B_pad, n_out_pad), x.dtype),
        grid=(grid_b,),
        in_specs=in_specs,
        out_specs=pl.BlockSpec((tile, n_out_pad), x_map),
        compiler_params=pltpu.CompilerParams(
            dimension_semantics=("parallel",)),
    )(*args)
    if B_pad != B or n_out_pad != n_out:
        out = out[:B, :n_out]
    return out


def init_qpolicy_params(key, n_states, n_actions):
    """Deterministic init matching nn.Linear default (U[-1/sqrt(fan_in), +])."""
    # Layer dims follow the module: n_states -> 32 -> 64 -> 32 -> 4
    dims = [(n_states, 32), (32, 64), (64, 32), (32, 4)]
    params = {}
    for i, (fan_in, fan_out) in enumerate(dims, start=1):
        key, kw, kb = jax.random.split(key, 3)
        bound = 1.0 / jnp.sqrt(jnp.float32(fan_in))
        # PyTorch stores weight as [out, in]; we store transposed [in, out].
        params[f"w{i}"] = jax.random.uniform(
            kw, (fan_in, fan_out), jnp.float32, -bound, bound)
        params[f"b{i}"] = jax.random.uniform(
            kb, (1, fan_out), jnp.float32, -bound, bound)
    return params


def qpolicy_reference(x, params):
    h = x
    for i in range(1, 4):
        h = jnp.tanh(h @ params[f"w{i}"] + params[f"b{i}"])
    return h @ params["w4"] + params["b4"]


if __name__ == "__main__":
    key = jax.random.PRNGKey(0)
    n_states, n_actions = 16, 4  # final layer is hard-coded to 4 in the module

    kparam, kx1, kx2 = jax.random.split(key, 3)
    params = init_qpolicy_params(kparam, n_states, n_actions)

    # 1) Small batch, exact f32 compute path, grid=1 (no padding at all).
    x_small = jax.random.normal(kx1, (8, n_states), jnp.float32)
    out_small = jax.block_until_ready(
        qpolicy_forward(x_small, params, compute_dtype=jnp.float32))
    ref_small = qpolicy_reference(x_small, params)
    assert out_small.shape == (8, 4), out_small.shape
    assert jnp.allclose(out_small, ref_small, atol=1e-5, rtol=1e-5), \
        "f32 path mismatch vs reference"

    # 2) Larger batch, default bf16 MXU path.
    x_big = jax.random.normal(kx2, (500, n_states), jnp.float32)
    ref_big = qpolicy_reference(x_big, params)

    # 2a) Auto tile: whole batch in one grid step (tile=B=500, no pad copy).
    out_auto = jax.block_until_ready(qpolicy_forward(x_big, params))
    assert out_auto.shape == (500, 4), out_auto.shape
    assert jnp.allclose(out_auto, ref_big, atol=5e-2, rtol=5e-2), \
        "bf16 grid=1 path mismatch vs reference"

    # 2b) Forced multi-step tiled path (grid=4, even split, <1 tile padding).
    out_tiled = jax.block_until_ready(
        qpolicy_forward(x_big, params, batch_tile=128))
    assert out_tiled.shape == (500, 4), out_tiled.shape
    assert jnp.allclose(out_tiled, ref_big, atol=5e-2, rtol=5e-2), \
        "bf16 tiled path mismatch vs reference"

    print("KERNEL_OK")
</pallas_src>

<mosaic_0001>
module attributes {stable_mosaic.version = 11 : i64} {
  func.func @_mlp_kernel(%arg0: i32, %arg1: memref<8x16xf32, #tpu.memory_space<vmem>>, %arg2: memref<16x32xf32, #tpu.memory_space<vmem>>, %arg3: memref<1x32xf32, #tpu.memory_space<vmem>>, %arg4: memref<32x64xf32, #tpu.memory_space<vmem>>, %arg5: memref<1x64xf32, #tpu.memory_space<vmem>>, %arg6: memref<64x32xf32, #tpu.memory_space<vmem>>, %arg7: memref<1x32xf32, #tpu.memory_space<vmem>>, %arg8: memref<32x128xf32, #tpu.memory_space<vmem>>, %arg9: memref<1x128xf32, #tpu.memory_space<vmem>>, %arg10: memref<8x128xf32, #tpu.memory_space<vmem>>) attributes {dimension_semantics = [#tpu.dimension_semantics<parallel>], iteration_bounds = array<i64: 1>, scalar_prefetch = 0 : i64, scratch_operands = 0 : i64, tpu.core_type = #tpu.core_type<tc>, window_params = [{transform_indices = @transform_0, window_bounds = array<i64: 8, 16>}, {pipeline_mode = #tpu.pipeline_mode<synchronous>, transform_indices = @transform_1, window_bounds = array<i64: 16, 32>}, {pipeline_mode = #tpu.pipeline_mode<synchronous>, transform_indices = @transform_2, window_bounds = array<i64: 1, 32>}, {pipeline_mode = #tpu.pipeline_mode<synchronous>, transform_indices = @transform_3, window_bounds = array<i64: 32, 64>}, {pipeline_mode = #tpu.pipeline_mode<synchronous>, transform_indices = @transform_4, window_bounds = array<i64: 1, 64>}, {pipeline_mode = #tpu.pipeline_mode<synchronous>, transform_indices = @transform_5, window_bounds = array<i64: 64, 32>}, {pipeline_mode = #tpu.pipeline_mode<synchronous>, transform_indices = @transform_6, window_bounds = array<i64: 1, 32>}, {pipeline_mode = #tpu.pipeline_mode<synchronous>, transform_indices = @transform_7, window_bounds = array<i64: 32, 128>}, {pipeline_mode = #tpu.pipeline_mode<synchronous>, transform_indices = @transform_8, window_bounds = array<i64: 1, 128>}, {transform_indices = @transform_9, window_bounds = array<i64: 8, 128>}]} {
    %c0 = arith.constant 0 : index
    %c0_0 = arith.constant 0 : index
    %0 = vector.load %arg1[%c0, %c0_0] : memref<8x16xf32, #tpu.memory_space<vmem>>, vector<8x16xf32>
    %c0_1 = arith.constant 0 : index
    %c0_2 = arith.constant 0 : index
    %1 = vector.load %arg2[%c0_1, %c0_2] : memref<16x32xf32, #tpu.memory_space<vmem>>, vector<16x32xf32>
    %cst = arith.constant dense<0.000000e+00> : vector<8x32xf32>
    %2 = tpu.matmul %0, %1, %cst {dimension_numbers = #tpu.dot_dimension_numbers<[1], [0], [0], [1], [0, 0, 1, 1], [], []>} : vector<8x16xf32>, vector<16x32xf32>, vector<8x32xf32> -> vector<8x32xf32>
    %c0_3 = arith.constant 0 : index
    %c0_4 = arith.constant 0 : index
    %3 = vector.load %arg3[%c0_3, %c0_4] : memref<1x32xf32, #tpu.memory_space<vmem>>, vector<1x32xf32>
    %4 = vector.broadcast %3 : vector<1x32xf32> to vector<8x32xf32>
    %5 = arith.addf %2, %4 : vector<8x32xf32>
    %6 = math.tanh %5 : vector<8x32xf32>
    %c0_5 = arith.constant 0 : index
    %c0_6 = arith.constant 0 : index
    %7 = vector.load %arg4[%c0_5, %c0_6] : memref<32x64xf32, #tpu.memory_space<vmem>>, vector<32x64xf32>
    %cst_7 = arith.constant dense<0.000000e+00> : vector<8x64xf32>
    %8 = tpu.matmul %6, %7, %cst_7 {dimension_numbers = #tpu.dot_dimension_numbers<[1], [0], [0], [1], [0, 0, 1, 1], [], []>} : vector<8x32xf32>, vector<32x64xf32>, vector<8x64xf32> -> vector<8x64xf32>
    %c0_8 = arith.constant 0 : index
    %c0_9 = arith.constant 0 : index
    %9 = vector.load %arg5[%c0_8, %c0_9] : memref<1x64xf32, #tpu.memory_space<vmem>>, vector<1x64xf32>
    %10 = vector.broadcast %9 : vector<1x64xf32> to vector<8x64xf32>
    %11 = arith.addf %8, %10 : vector<8x64xf32>
    %12 = math.tanh %11 : vector<8x64xf32>
    %c0_10 = arith.constant 0 : index
    %c0_11 = arith.constant 0 : index
    %13 = vector.load %arg6[%c0_10, %c0_11] : memref<64x32xf32, #tpu.memory_space<vmem>>, vector<64x32xf32>
    %cst_12 = arith.constant dense<0.000000e+00> : vector<8x32xf32>
    %14 = tpu.matmul %12, %13, %cst_12 {dimension_numbers = #tpu.dot_dimension_numbers<[1], [0], [0], [1], [0, 0, 1, 1], [], []>} : vector<8x64xf32>, vector<64x32xf32>, vector<8x32xf32> -> vector<8x32xf32>
    %c0_13 = arith.constant 0 : index
    %c0_14 = arith.constant 0 : index
    %15 = vector.load %arg7[%c0_13, %c0_14] : memref<1x32xf32, #tpu.memory_space<vmem>>, vector<1x32xf32>
    %16 = vector.broadcast %15 : vector<1x32xf32> to vector<8x32xf32>
    %17 = arith.addf %14, %16 : vector<8x32xf32>
    %18 = math.tanh %17 : vector<8x32xf32>
    %c0_15 = arith.constant 0 : index
    %c0_16 = arith.constant 0 : index
    %19 = vector.load %arg8[%c0_15, %c0_16] : memref<32x128xf32, #tpu.memory_space<vmem>>, vector<32x128xf32>
    %cst_17 = arith.constant dense<0.000000e+00> : vector<8x128xf32>
    %20 = tpu.matmul %18, %19, %cst_17 {dimension_numbers = #tpu.dot_dimension_numbers<[1], [0], [0], [1], [0, 0, 1, 1], [], []>} : vector<8x32xf32>, vector<32x128xf32>, vector<8x128xf32> -> vector<8x128xf32>
    %c0_18 = arith.constant 0 : index
    %c0_19 = arith.constant 0 : index
    %21 = vector.load %arg9[%c0_18, %c0_19] : memref<1x128xf32, #tpu.memory_space<vmem>>, vector<1x128xf32>
    %22 = vector.broadcast %21 : vector<1x128xf32> to vector<8x128xf32>
    %23 = arith.addf %20, %22 : vector<8x128xf32>
    %c0_20 = arith.constant 0 : index
    %c0_21 = arith.constant 0 : index
    %24 = vector.load %arg10[%c0_20, %c0_21] : memref<8x128xf32, #tpu.memory_space<vmem>>, vector<8x128xf32>
    tpu.vector_store %arg10[%c0_20, %c0_21], %23 {strides = array<i32>} : memref<8x128xf32, #tpu.memory_space<vmem>>, vector<8x128xf32>,
    return
  }
  func.func @transform_0(%arg0: i32) -> (i32, i32) {
    %c0_i32 = arith.constant 0 : i32
    %c0_i32_0 = arith.constant 0 : i32
    return %arg0, %c0_i32 : i32, i32
  }
  func.func @transform_1(%arg0: i32) -> (i32, i32) {
    %c0_i32 = arith.constant 0 : i32
    %c0_i32_0 = arith.constant 0 : i32
    %c0_i32_1 = arith.constant 0 : i32
    return %c0_i32, %c0_i32_0 : i32, i32
  }
  func.func @transform_2(%arg0: i32) -> (i32, i32) {
    %c0_i32 = arith.constant 0 : i32
    %c0_i32_0 = arith.constant 0 : i32
    %c0_i32_1 = arith.constant 0 : i32
    return %c0_i32, %c0_i32_0 : i32, i32
  }
  func.func @transform_3(%arg0: i32) -> (i32, i32) {
    %c0_i32 = arith.constant 0 : i32
    %c0_i32_0 = arith.constant 0 : i32
    %c0_i32_1 = arith.constant 0 : i32
    return %c0_i32, %c0_i32_0 : i32, i32
  }
  func.func @transform_4(%arg0: i32) -> (i32, i32) {
    %c0_i32 = arith.constant 0 : i32
    %c0_i32_0 = arith.constant 0 : i32
    %c0_i32_1 = arith.constant 0 : i32
    return %c0_i32, %c0_i32_0 : i32, i32
  }
  func.func @transform_5(%arg0: i32) -> (i32, i32) {
    %c0_i32 = arith.constant 0 : i32
    %c0_i32_0 = arith.constant 0 : i32
    %c0_i32_1 = arith.constant 0 : i32
    return %c0_i32, %c0_i32_0 : i32, i32
  }
  func.func @transform_6(%arg0: i32) -> (i32, i32) {
    %c0_i32 = arith.constant 0 : i32
    %c0_i32_0 = arith.constant 0 : i32
    %c0_i32_1 = arith.constant 0 : i32
    return %c0_i32, %c0_i32_0 : i32, i32
  }
  func.func @transform_7(%arg0: i32) -> (i32, i32) {
    %c0_i32 = arith.constant 0 : i32
    %c0_i32_0 = arith.constant 0 : i32
    %c0_i32_1 = arith.constant 0 : i32
    return %c0_i32, %c0_i32_0 : i32, i32
  }
  func.func @transform_8(%arg0: i32) -> (i32, i32) {
    %c0_i32 = arith.constant 0 : i32
    %c0_i32_0 = arith.constant 0 : i32
    %c0_i32_1 = arith.constant 0 : i32
    return %c0_i32, %c0_i32_0 : i32, i32
  }
  func.func @transform_9(%arg0: i32) -> (i32, i32) {
    %c0_i32 = arith.constant 0 : i32
    %c0_i32_0 = arith.constant 0 : i32
    return %arg0, %c0_i32 : i32, i32
  }
}

</mosaic_0001>

<llo_original>
// kernel: tpu_custom_call.1
$region0: #{tpu_custom_call.1}
  #allocation0 [shape = 'u32[]', space=smem, size = 0x4, offset = 0x4, fixed_abs, tag = 'smem constant byte address 0x4 - core index']
  #allocation1 [shape = 'u32[72,128]{1,0:T(1,128)}', space=vmem, size = 0x9000, scoped, tag = 'internal scratch']
  %s0 = inlined_call_operand.vmem [shape: f32[8,16], index: 0, kind: input, shape index: {}]
  %s1 = inlined_call_operand.vmem [shape: f32[16,32], index: 1, kind: input, shape index: {}]
  %s2 = inlined_call_operand.vmem [shape: f32[1,32], index: 2, kind: input, shape index: {}]
  %s3 = inlined_call_operand.vmem [shape: f32[32,64], index: 3, kind: input, shape index: {}]
  %s4 = inlined_call_operand.vmem [shape: f32[1,64], index: 4, kind: input, shape index: {}]
  %s5 = inlined_call_operand.vmem [shape: f32[64,32], index: 5, kind: input, shape index: {}]
  %s6 = inlined_call_operand.vmem [shape: f32[1,32], index: 6, kind: input, shape index: {}]
  %s7 = inlined_call_operand.vmem [shape: f32[32,128], index: 7, kind: input, shape index: {}]
  %s8 = inlined_call_operand.vmem [shape: f32[1,128], index: 8, kind: input, shape index: {}]
  %s9 = inlined_call_operand.hbm [shape: f32[8,128], index: 9, kind: output, shape index: {}]
  %s10 = sld [smem:[#allocation0]]
  $region46: #{tpu_custom_call.1} parent=0
    _
  %s12 = ssub.s32 1, %s10
  %s13 = scalar_select 0, %s12, %s10
  $region1: #{tpu_custom_call.1} parent=0
    #allocation2 [shape = 'u8[4096]{0}', space=vmem, size = 0x1000, scoped, tag = 'output window, operand 0, single buffered']
    #allocation3 [shape = 's32[1]{0}', space=sflag, size = 0x4, scoped, tag = 'scoped memory for tpu_custom_call.1']
    %14 = vsyncpa [#allocation3], 0
    // Predicated region
    $region2: #{tpu_custom_call.1} parent=1 // pred_check
      _
    $region3: #{tpu_custom_call.1} parent=1 // pred_check_branch
      %16 = sbr.rel (0) target = $region5
    $region4: #{tpu_custom_call.1} parent=1 // pred_region
      _
    $region5: #{tpu_custom_call.1} parent=1 // pred_fallthru
      _
    // Predicated region
    $region6: #{tpu_custom_call.1} parent=1 // pred_check
      _
    $region7: #{tpu_custom_call.1} parent=1 // pred_check_branch
      %18 = sbr.rel (0) target = $region9
    $region8: #{tpu_custom_call.1} parent=1 // pred_region
      _
    $region9: #{tpu_custom_call.1} parent=1 // pred_fallthru
      _
    // Predicated region
    $region10: #{tpu_custom_call.1} parent=1 // pred_check
      _
    $region11: #{tpu_custom_call.1} parent=1 // pred_check_branch
      %20 = sbr.rel (0) target = $region13
    $region12: #{tpu_custom_call.1} parent=1 // pred_region
      _
    $region13: #{tpu_custom_call.1} parent=1 // pred_fallthru
      _
    // Predicated region
    $region14: #{tpu_custom_call.1} parent=1 // pred_check
      _
    $region15: #{tpu_custom_call.1} parent=1 // pred_check_branch
      %22 = sbr.rel (0) target = $region17
    $region16: #{tpu_custom_call.1} parent=1 // pred_region
      _
    $region17: #{tpu_custom_call.1} parent=1 // pred_fallthru
      _
    // Predicated region
    $region18: #{tpu_custom_call.1} parent=1 // pred_check
      _
    $region19: #{tpu_custom_call.1} parent=1 // pred_check_branch
      %24 = sbr.rel (0) target = $region21
    $region20: #{tpu_custom_call.1} parent=1 // pred_region
      _
    $region21: #{tpu_custom_call.1} parent=1 // pred_fallthru
      _
    // Predicated region
    $region22: #{tpu_custom_call.1} parent=1 // pred_check
      _
    $region23: #{tpu_custom_call.1} parent=1 // pred_check_branch
      %26 = sbr.rel (0) target = $region25
    $region24: #{tpu_custom_call.1} parent=1 // pred_region
      _
    $region25: #{tpu_custom_call.1} parent=1 // pred_fallthru
      _
    // Predicated region
    $region26: #{tpu_custom_call.1} parent=1 // pred_check
      _
    $region27: #{tpu_custom_call.1} parent=1 // pred_check_branch
      %28 = sbr.rel (0) target = $region29
    $region28: #{tpu_custom_call.1} parent=1 // pred_region
      _
    $region29: #{tpu_custom_call.1} parent=1 // pred_fallthru
      _
    // Predicated region
    $region30: #{tpu_custom_call.1} parent=1 // pred_check
      _
    $region31: #{tpu_custom_call.1} parent=1 // pred_check_branch
      %30 = sbr.rel (0) target = $region33
    $region32: #{tpu_custom_call.1} parent=1 // pred_region
      _
    $region33: #{tpu_custom_call.1} parent=1 // pred_fallthru
      _
    // Predicated region
    $region34: #{tpu_custom_call.1} parent=1 // pred_check
      _
    $region35: #{tpu_custom_call.1} parent=1 // pred_check_branch
      %32 = sbr.rel (0) target = $region37
    $region36: #{tpu_custom_call.1} parent=1 // pred_region
      _
    $region37: #{tpu_custom_call.1} parent=1 // pred_fallthru
      _
    %v33 = vld [vmem:[%s0] sm:$0xff]
    %v34 = vld [vmem:[%s1] sm:$0xff]
    %v35 = vld [vmem:[%s1 + $0x8] sm:$0xff]
    %v36 = vld [vmem:[%s2] sm:$0x1]
    %v38 = vperm.slane %v36, 0
    %vm40 = vcmask 130048
    %v42 = vsel %vm40, %v33, 0
    %44 = vmatpush.msra.mxu0 0.0
    %45 = vmatpush.msra.mxu0 0.0
    %46 = vmatpush.msra.mxu0 0.0
    %47 = vmatpush.msra.mxu0 0.0
    %48 = vmatpush.msra.mxu0 0.0
    %49 = vmatpush.msra.mxu0 0.0
    %50 = vmatpush.msra.mxu0 0.0
    %51 = vmatpush.msra.mxu0 0.0
    %52 = vmatpush.msra.mxu0 0.0
    %53 = vmatpush.msra.mxu0 0.0
    %54 = vmatpush.msra.mxu0 0.0
    %55 = vmatpush.msra.mxu0 0.0
    %56 = vmatpush.msra.mxu0 0.0
    %57 = vmatpush.msra.mxu0 0.0
    %58 = vmatpush.msra.mxu0 %v35
    %59 = vmatpush.msra.mxu0 %v34
    %60 = vmatmul.f32.gmra.mxu0 %v42
    %v61 = vpop.f32.mrf.mxu0
    %v62 = vadd.f32 %v38, %v61
    %63 = vdwg.mxu0
    %v64 = vtanh.pop %v62
    %v65 = vld [vmem:[%s3] sm:$0xff]
    %v66 = vld [vmem:[%s3 + $0x8] sm:$0xff]
    %v67 = vld [vmem:[%s3 + $0x10] sm:$0xff]
    %v68 = vld [vmem:[%s3 + $0x18] sm:$0xff]
    %v69 = vld [vmem:[%s4] sm:$0x1]
    %v71 = vperm.slane %v69, 0
    %vm73 = vcmask 261120
    %v75 = vsel %vm73, %v64, 0
    %77 = vmatpush.msra.mxu0 0.0
    %78 = vmatpush.msra.mxu0 0.0
    %79 = vmatpush.msra.mxu0 0.0
    %80 = vmatpush.msra.mxu0 0.0
    %81 = vmatpush.msra.mxu0 0.0
    %82 = vmatpush.msra.mxu0 0.0
    %83 = vmatpush.msra.mxu0 0.0
    %84 = vmatpush.msra.mxu0 0.0
    %85 = vmatpush.msra.mxu0 0.0
    %86 = vmatpush.msra.mxu0 0.0
    %87 = vmatpush.msra.mxu0 0.0
    %88 = vmatpush.msra.mxu0 0.0
    %89 = vmatpush.msra.mxu0 %v68
    %90 = vmatpush.msra.mxu0 %v67
    %91 = vmatpush.msra.mxu0 %v66
    %92 = vmatpush.msra.mxu0 %v65
    %93 = vmatmul.f32.gmra.mxu0 %v75
    %v94 = vpop.f32.mrf.mxu0
    %v95 = vadd.f32 %v71, %v94
    %96 = vdwg.mxu0
    %v97 = vtanh.pop %v95
    %v98 = vld [vmem:[%s5] sm:$0xff]
    %v99 = vld [vmem:[%s5 + $0x8] sm:$0xff]
    %v100 = vld [vmem:[%s5 + $0x10] sm:$0xff]
    %v101 = vld [vmem:[%s5 + $0x18] sm:$0xff]
    %v102 = vld [vmem:[%s5 + $0x20] sm:$0xff]
    %v103 = vld [vmem:[%s5 + $0x28] sm:$0xff]
    %v104 = vld [vmem:[%s5 + $0x30] sm:$0xff]
    %v105 = vld [vmem:[%s5 + $0x38] sm:$0xff]
    %v106 = vld [vmem:[%s6] sm:$0x1]
    %v108 = vperm.slane %v106, 0
    %vm110 = vcmask 523264
    %v112 = vsel %vm110, %v97, 0
    %114 = vmatpush.msra.mxu0 0.0
    %115 = vmatpush.msra.mxu0 0.0
    %116 = vmatpush.msra.mxu0 0.0
    %117 = vmatpush.msra.mxu0 0.0
    %118 = vmatpush.msra.mxu0 0.0
    %119 = vmatpush.msra.mxu0 0.0
    %120 = vmatpush.msra.mxu0 0.0
    %121 = vmatpush.msra.mxu0 0.0
    %122 = vmatpush.msra.mxu0 %v105
    %123 = vmatpush.msra.mxu0 %v104
    %124 = vmatpush.msra.mxu0 %v103
    %125 = vmatpush.msra.mxu0 %v102
    %126 = vmatpush.msra.mxu0 %v101
    %127 = vmatpush.msra.mxu0 %v100
    %128 = vmatpush.msra.mxu0 %v99
    %129 = vmatpush.msra.mxu0 %v98
    %130 = vmatmul.f32.gmra.mxu0 %v112
    %v131 = vpop.f32.mrf.mxu0
    %v132 = vadd.f32 %v108, %v131
    %133 = vdwg.mxu0
    %v134 = vtanh.pop %v132
    %v135 = vld [vmem:[%s7] sm:$0xff]
    %v136 = vld [vmem:[%s7 + $0x8] sm:$0xff]
    %v137 = vld [vmem:[%s7 + $0x10] sm:$0xff]
    %v138 = vld [vmem:[%s7 + $0x18] sm:$0xff]
    %v139 = vld [vmem:[%s8] sm:$0x1]
    %v141 = vperm.slane %v139, 0
    %v144 = vsel %vm73, %v134, 0
    %146 = vmatpush.msra.mxu0 0.0
    %147 = vmatpush.msra.mxu0 0.0
    %148 = vmatpush.msra.mxu0 0.0
    %149 = vmatpush.msra.mxu0 0.0
    %150 = vmatpush.msra.mxu0 0.0
    %151 = vmatpush.msra.mxu0 0.0
    %152 = vmatpush.msra.mxu0 0.0
    %153 = vmatpush.msra.mxu0 0.0
    %154 = vmatpush.msra.mxu0 0.0
    %155 = vmatpush.msra.mxu0 0.0
    %156 = vmatpush.msra.mxu0 0.0
    %157 = vmatpush.msra.mxu0 0.0
    %158 = vmatpush.msra.mxu0 %v138
    %159 = vmatpush.msra.mxu0 %v137
    %160 = vmatpush.msra.mxu0 %v136
    %161 = vmatpush.msra.mxu0 %v135
    %162 = vmatmul.f32.gmra.mxu0 %v144
    %v163 = vpop.f32.mrf.mxu0
    %v164 = vadd.f32 %v141, %v163
    %165 = vdwg.mxu0
    %166 = vst [vmem:[#allocation2] sm:$0xff] %v164
    // Predicated region
    $region38: #{tpu_custom_call.1} parent=1 // pred_check
      _
    $region39: #{tpu_custom_call.1} parent=1 // pred_check_branch
      %168 = sbr.rel (0) target = $region41
    $region40: #{tpu_custom_call.1} parent=1 // pred_region
      %170 = vsyncadd [#allocation3], 0
      %s172 = sshll.u32 [#allocation2], 4
      %s173 = int_to_ptr.vmem [resolvable:$true] %s172
      %s174 = sshll.u32 %s9, 4
      %s175 = int_to_ptr.hbm [resolvable:$true] %s174
      %177 = dma.vmem_to_hbm [thread:$0]  %s173, 128, %s175, [#allocation3]
    $region41: #{tpu_custom_call.1} parent=1 // pred_fallthru
      _
    // Predicated region
    $region42: #{tpu_custom_call.1} parent=1 // pred_check
      _
    $region43: #{tpu_custom_call.1} parent=1 // pred_check_branch
      %179 = sbr.rel (0) target = $region45
    $region44: #{tpu_custom_call.1} parent=1 // pred_region
      %181 = dma.done [#allocation3], 128
    $region45: #{tpu_custom_call.1} parent=1 // pred_fallthru
      _
    %182 = vsyncpa [#allocation3], 1

</llo_original>
